<compile_context>
chip_gen: v7x
topology: tpu7x:2x2x1
jax: 0.10.0
libtpu: 0.0.40
codegen_flags: <defaults>
</compile_context>

<pallas_src>
import functools

import jax
import jax.numpy as jnp
from jax.experimental import pallas as pl
from jax.experimental.pallas import tpu as pltpu


def _clipped_relu_kernel(x_ref, o_ref):
    # clamp(relu(x), 0, 1) == clip(x, 0, 1): two VPU ops per vreg.
    x = x_ref[...]
    zero = jnp.zeros((), dtype=x.dtype)
    one = jnp.ones((), dtype=x.dtype)
    o_ref[...] = jnp.minimum(jnp.maximum(x, zero), one)


_MAX_LANES = 4096          # widest lane-dense slab we consider (multiple of 128)
_MIN_SPLIT_BYTES = 1 << 20  # tensors above this always get >= _MIN_GRID_STEPS
_MIN_GRID_STEPS = 4         # lets in-DMA / out-DMA overlap and v7x megacore shard


@functools.lru_cache(maxsize=1)
def _tpu_generation():
    """Best-effort TPU generation (5/6/7/...) from device_kind, else None."""
    try:
        kind = jax.devices()[0].device_kind.lower()
    except Exception:  # pragma: no cover - defensive
        return None
    for gen in (7, 6, 5, 4):
        if f"v{gen}" in kind:
            return gen
    return None


def _pick_lane_width(n):
    """Largest multiple of 128 (<= _MAX_LANES) that divides n, else None."""
    w = (min(n, _MAX_LANES) // 128) * 128
    while w >= 128:
        if n % w == 0:
            return w
        w -= 128
    return None


def clipped_relu(x, *, donate_input=False):
    """Applies clamp(relu(x), 0.0, 1.0) elementwise. Any shape / float dtype."""
    orig_shape = x.shape
    dtype = x.dtype
    n = x.size
    if n == 0:
        return x

    if not jnp.issubdtype(dtype, jnp.floating):
        # Module is defined for float activations; for other dtypes the XLA
        # fused clip has identical semantics with no extra HBM passes.
        return jnp.clip(x, 0, 1).astype(dtype)

    W = _pick_lane_width(n)
    if W is None:
        # Truly ragged element count: no zero-copy lane-dense layout exists.
        # XLA's fused elementwise clip is already ~HBM roofline; a pad + slice
        # around a Pallas call would add 1-2 extra full HBM passes.
        return jnp.clip(x, 0.0, 1.0)

    itemsize = jnp.dtype(dtype).itemsize
    # Sublane granularity: 8 for 32-bit, 16 for bf16, 32 for int8/fp8 packing.
    sub = max(8, 32 // itemsize)
    rows = n // W
    total_bytes = n * itemsize

    # Generation-gated block size: bigger blocks amortize the ~0.35 us/step
    # overhead on v7x's fast HBM; v5e's 16 MiB scoped VMEM keeps us at 2 MiB.
    gen = _tpu_generation()
    if gen is not None and gen >= 7:
        target_block_bytes = 8 << 20
        vmem_limit_bytes = 40 << 20   # 4 pipeline buffers x 8 MiB needs headroom
    elif gen == 6:
        target_block_bytes = 4 << 20  # 4 x 4 MiB fits the 32 MiB default scope
        vmem_limit_bytes = None
    else:
        target_block_bytes = 2 << 20  # safe inside v5e's 16 MiB default scope
        vmem_limit_bytes = None

    if total_bytes <= _MIN_SPLIT_BYTES:
        # Single block equal to the full array dims (always a legal block
        # shape, even when rows < 8).
        tile_rows = rows
        grid_rows = 1
    else:
        target_rows = max(sub, (target_block_bytes // (W * itemsize)) // sub * sub)
        # Never collapse a big tensor into <4 grid steps: keeps the software
        # pipeline full and lets the "parallel" axis shard across v7x's 2 TCs.
        depth_cap = max(sub, (rows // _MIN_GRID_STEPS) // sub * sub)
        tile_rows = min(target_rows, depth_cap)
        grid_rows = pl.cdiv(rows, tile_rows)
        # rows need not be a multiple of tile_rows: the trailing partial block
        # is handled by Pallas (masked writes; garbage reads clip harmlessly).

    x2d = jnp.ravel(x).reshape(rows, W)

    out2d = pl.pallas_call(
        _clipped_relu_kernel,
        out_shape=jax.ShapeDtypeStruct((rows, W), dtype),
        grid_spec=pltpu.PrefetchScalarGridSpec(
            num_scalar_prefetch=0,
            grid=(grid_rows,),
            in_specs=[pl.BlockSpec((tile_rows, W), lambda i: (i, 0))],
            out_specs=pl.BlockSpec((tile_rows, W), lambda i: (i, 0)),
        ),
        compiler_params=pltpu.CompilerParams(
            dimension_semantics=("parallel",),
            vmem_limit_bytes=vmem_limit_bytes,
        ),
        # When the caller donates x, reuse its HBM buffer for the output and
        # skip the second full-size allocation / XLA copy.
        input_output_aliases=({0: 0} if donate_input else {}),
    )(x2d)

    return out2d.reshape(orig_shape)


if __name__ == "__main__":
    key = jax.random.PRNGKey(0)

    def _ref(x):
        return jnp.clip(jax.nn.relu(x), 0.0, 1.0)

    k0, k1, k2 = jax.random.split(key, 3)

    # 1) Module-sized NCHW input (single-block path, zero-copy lane layout).
    x = jax.random.normal(k0, (2, 4, 16, 16), dtype=jnp.float32) * 2.0
    out = jax.block_until_ready(clipped_relu(x))
    assert out.shape == x.shape and out.dtype == x.dtype
    assert jnp.allclose(out, _ref(x)), "mismatch vs reference (f32 small)"

    # 2) Larger tensor exercising the multi-block tiled path (>= 4 grid steps).
    x_big = jax.random.normal(k1, (16, 16, 64, 64), dtype=jnp.float32) * 2.0
    out_big = jax.block_until_ready(clipped_relu(x_big))
    assert jnp.allclose(out_big, _ref(x_big)), "mismatch vs reference (f32 big)"

    # 3) bf16 ragged size -> XLA fused clip fallback (no pad/slice HBM passes).
    x_bf = (jax.random.normal(k2, (3, 5, 7, 11), dtype=jnp.float32) * 2.0
            ).astype(jnp.bfloat16)
    out_bf = jax.block_until_ready(clipped_relu(x_bf))
    assert out_bf.dtype == jnp.bfloat16
    assert jnp.allclose(out_bf.astype(jnp.float32),
                        _ref(x_bf.astype(jnp.float32)),
                        atol=1e-2), "mismatch vs reference (bf16 ragged)"

    print("KERNEL_OK")
</pallas_src>

<mosaic_0001>
module attributes {stable_mosaic.version = 11 : i64} {
  func.func @_clipped_relu_kernel(%arg0: i32, %arg1: memref<1x2048xf32, #tpu.memory_space<vmem>>, %arg2: memref<1x2048xf32, #tpu.memory_space<vmem>>) attributes {dimension_semantics = [#tpu.dimension_semantics<parallel>], iteration_bounds = array<i64: 1>, scalar_prefetch = 0 : i64, scratch_operands = 0 : i64, tpu.core_type = #tpu.core_type<tc>, window_params = [{transform_indices = @transform_0, window_bounds = array<i64: 1, 2048>}, {transform_indices = @transform_1, window_bounds = array<i64: 1, 2048>}]} {
    %c0 = arith.constant 0 : index
    %c0_0 = arith.constant 0 : index
    %0 = vector.load %arg1[%c0, %c0_0] : memref<1x2048xf32, #tpu.memory_space<vmem>>, vector<1x2048xf32>
    %cst = arith.constant 0.000000e+00 : f32
    %1 = vector.broadcast %cst : f32 to vector<1x2048xf32>
    %2 = arith.maximumf %0, %1 : vector<1x2048xf32>
    %cst_1 = arith.constant 1.000000e+00 : f32
    %3 = vector.broadcast %cst_1 : f32 to vector<1x2048xf32>
    %4 = arith.minimumf %2, %3 : vector<1x2048xf32>
    %c0_2 = arith.constant 0 : index
    %c0_3 = arith.constant 0 : index
    %5 = vector.load %arg2[%c0_2, %c0_3] : memref<1x2048xf32, #tpu.memory_space<vmem>>, vector<1x2048xf32>
    tpu.vector_store %arg2[%c0_2, %c0_3], %4 {strides = array<i32>} : memref<1x2048xf32, #tpu.memory_space<vmem>>, vector<1x2048xf32>,
    return
  }
  func.func @transform_0(%arg0: i32) -> (i32, i32) {
    %c0_i32 = arith.constant 0 : i32
    %c0_i32_0 = arith.constant 0 : i32
    return %arg0, %c0_i32 : i32, i32
  }
  func.func @transform_1(%arg0: i32) -> (i32, i32) {
    %c0_i32 = arith.constant 0 : i32
    %c0_i32_0 = arith.constant 0 : i32
    return %arg0, %c0_i32 : i32, i32
  }
}

</mosaic_0001>

<llo_original>
// kernel: tpu_custom_call.1
$region0: #{tpu_custom_call.1}
  #allocation0 [shape = 'u32[]', space=smem, size = 0x4, offset = 0x4, fixed_abs, tag = 'smem constant byte address 0x4 - core index']
  #allocation1 [shape = 'u32[144,128]{1,0:T(1,128)}', space=vmem, size = 0x12000, scoped, tag = 'internal scratch']
  %s0 = inlined_call_operand.hbm [shape: f32[1,2048], index: 0, kind: input, shape index: {}]
  %s1 = inlined_call_operand.hbm [shape: f32[1,2048], index: 1, kind: output, shape index: {}]
  %s2 = sld [smem:[#allocation0]]
  $region18: #{tpu_custom_call.1} parent=0
    _
  %s4 = ssub.s32 1, %s2
  %s5 = scalar_select 0, %s4, %s2
  $region1: #{tpu_custom_call.1} parent=0
    #allocation2 [shape = 'u8[8192]{0}', space=vmem, size = 0x2000, scoped, tag = 'input window, operand 0, single buffered']
    #allocation3 [shape = 's32[1]{0}', space=sflag, size = 0x4, scoped, tag = 'scoped memory for tpu_custom_call.1']
    #allocation4 [shape = 's32[1]{0}', space=sflag, size = 0x4, scoped, tag = 'scoped memory for tpu_custom_call.1']
    #allocation5 [shape = 'u8[8192]{0}', space=vmem, size = 0x2000, scoped, tag = 'output window, operand 0, single buffered']
    %6 = vsyncpa [#allocation3], 0
    %7 = vsyncpa [#allocation4], 0
    // Predicated region
    $region2: #{tpu_custom_call.1} parent=1 // pred_check
      _
    $region3: #{tpu_custom_call.1} parent=1 // pred_check_branch
      %9 = sbr.rel (0) target = $region5
    $region4: #{tpu_custom_call.1} parent=1 // pred_region
      %s11 = ssub.s32 256, 256
      %12 = vsyncadd [#allocation3], %s11
      %s14 = sshll.u32 [#allocation2], 4
      %s15 = int_to_ptr.vmem [resolvable:$true] %s14
      %17 = dma.hbm_to_vmem [thread:$0]  %s0, 256, %s15, [#allocation3]
    $region5: #{tpu_custom_call.1} parent=1 // pred_fallthru
      _
    // Predicated region
    $region6: #{tpu_custom_call.1} parent=1 // pred_check
      _
    $region7: #{tpu_custom_call.1} parent=1 // pred_check_branch
      %19 = sbr.rel (0) target = $region9
    $region8: #{tpu_custom_call.1} parent=1 // pred_region
      %20 = dma.done [#allocation3], 256
    $region9: #{tpu_custom_call.1} parent=1 // pred_fallthru
      _
    %v21 = vld [vmem:[#allocation2] sm:$0xff]
    %v22 = vld [vmem:[#allocation2 + $0x8] sm:$0xff]
    %v23 = vmax.f32 %v21, 0.0
    %v24 = vmax.f32 %v22, 0.0
    %v25 = vmin.f32 %v23, 1.0
    %v26 = vmin.f32 %v24, 1.0
    %27 = vst [vmem:[#allocation5] sm:$0xff] %v25
    %28 = vst [vmem:[#allocation5 + $0x8] sm:$0xff] %v26
    // Predicated region
    $region10: #{tpu_custom_call.1} parent=1 // pred_check
      _
    $region11: #{tpu_custom_call.1} parent=1 // pred_check_branch
      %30 = sbr.rel (0) target = $region13
    $region12: #{tpu_custom_call.1} parent=1 // pred_region
      %s32 = ssub.s32 256, 256
      %33 = vsyncadd [#allocation4], %s32
      %s35 = sshll.u32 [#allocation5], 4
      %s36 = int_to_ptr.vmem [resolvable:$true] %s35
      %38 = dma.vmem_to_hbm [thread:$0]  %s36, 256, %s1, [#allocation4]
    $region13: #{tpu_custom_call.1} parent=1 // pred_fallthru
      _
    // Predicated region
    $region14: #{tpu_custom_call.1} parent=1 // pred_check
      _
    $region15: #{tpu_custom_call.1} parent=1 // pred_check_branch
      %40 = sbr.rel (0) target = $region17
    $region16: #{tpu_custom_call.1} parent=1 // pred_region
      %41 = dma.done [#allocation4], 256
    $region17: #{tpu_custom_call.1} parent=1 // pred_fallthru
      _
    %42 = vsyncpa [#allocation3], 1
    %43 = vsyncpa [#allocation4], 1

</llo_original>
